<compile_context>
chip_gen: v5e
topology: v5e:2x2
jax: 0.10.0
libtpu: 0.0.40
codegen_flags: <defaults>
</compile_context>

<pallas_src>
import jax
import jax.numpy as jnp
from jax.experimental import pallas as pl
from jax.experimental.pallas import tpu as pltpu

PI = 3.141592653589793


# ---------------------------------------------------------------------------
# Kernel
# ---------------------------------------------------------------------------
def _make_cylinder_projection_kernel(num_layers, dim):
    def kernel(*refs):
        idx = 0
        sa, sg, sh, ra, rg, rh = refs[idx:idx + 6]; idx += 6
        w1a, w1g, w1h, b1 = refs[idx:idx + 4]; idx += 4
        mids = []
        for _ in range(num_layers - 1):
            mids.append((refs[idx], refs[idx + 1])); idx += 2
        w0, b0 = refs[idx:idx + 2]; idx += 2
        out_ref = refs[idx]

        # concat([sa+ra, sg+rg, sh+rh]) @ W1 == sum of three partial matmuls
        # against the row-blocks of W1 (avoids an in-kernel concatenate).
        axis_sum = sa[...] + ra[...]
        arg_sum = sg[...] + rg[...]
        height_sum = sh[...] + rh[...]

        h = (jnp.dot(axis_sum, w1a[...], preferred_element_type=jnp.float32)
             + jnp.dot(arg_sum, w1g[...], preferred_element_type=jnp.float32)
             + jnp.dot(height_sum, w1h[...], preferred_element_type=jnp.float32)
             + b1[...])
        h = h * jax.nn.sigmoid(h)  # SiLU

        # hidden layers 2..num_layers (unrolled; num_layers is static)
        for w_ref, b_ref in mids:
            h = jnp.dot(h, w_ref[...], preferred_element_type=jnp.float32) + b_ref[...]
            h = h * jax.nn.sigmoid(h)

        # layer0: single lane-dense [rows, 3*dim] pre-activation, then select
        # the per-chunk nonlinearity by lane index (EUP work, effectively free
        # in this HBM-bound kernel).
        pre = jnp.dot(h, w0[...], preferred_element_type=jnp.float32) + b0[...]
        col = jax.lax.broadcasted_iota(jnp.int32, pre.shape, 1)
        axis_val = jnp.tanh(pre) * PI
        arg_val = jnp.tanh(2.0 * pre) * (PI / 2.0) + (PI / 2.0)
        height_val = (jax.nn.sigmoid(2.0 * pre) - 0.5) * (2.0 * PI)
        merged = jnp.where(col < dim, axis_val,
                           jnp.where(col < 2 * dim, arg_val, height_val))
        out_ref[...] = merged.astype(out_ref.dtype)

    return kernel


# ---------------------------------------------------------------------------
# Wrapper
# ---------------------------------------------------------------------------
def cylinder_projection(source_axis, source_arg, source_height,
                        r_axis, r_arg, r_height, params, *, block_rows=None):
    """Fused CylinderProjection forward. Embeddings: [N, dim] each."""
    num_layers = params["num_layers"]
    N, dim = source_axis.shape
    hidden = params["b1"].shape[-1]
    dtype = source_axis.dtype
    itemsize = jnp.dtype(dtype).itemsize

    # ---- Row tiling: size from the streamed footprint (~6 MiB / step). ----
    # Streamed bytes per row = 6 inputs * dim + 1 output * 3*dim = 9*dim elems.
    if block_rows is None:
        target_bytes = 6 << 20
        block_rows = max(512, (target_bytes // (9 * dim * itemsize) // 8) * 8)
    # Guarantee >= 2 grid steps when N permits (v7x: 2 TCs per chip).
    if N >= 16:
        block_rows = min(block_rows, max(8, (N // 16) * 8))
    block_rows = min(block_rows, N)
    if block_rows != N:
        block_rows = max(8, (block_rows // 8) * 8)
    grid = (pl.cdiv(N, block_rows),)

    # Split W1 rows so the input concat is never materialized; keep W0/b0
    # whole so the output is a single lane-dense slab.
    w1, b1 = params["w1"], params["b1"]
    w0, b0 = params["w0"], params["b0"]
    w1a, w1g, w1h = w1[:dim], w1[dim:2 * dim], w1[2 * dim:]

    weight_args = [w1a, w1g, w1h, b1.reshape(1, hidden)]
    for nl in range(2, num_layers + 1):
        weight_args += [params[f"w{nl}"], params[f"b{nl}"].reshape(1, hidden)]
    weight_args += [w0, b0.reshape(1, 3 * dim)]

    # ---- VMEM budget: streamed tiles (double-buffered) + working set +
    # single-buffered weights; clamp so we stay safe on v7x (64 MiB physical).
    weight_bytes = sum(int(w.size) * w.dtype.itemsize for w in weight_args)
    stream_bytes = 2 * block_rows * 9 * dim * itemsize          # 2 pipeline bufs
    work_bytes = block_rows * (2 * hidden + 4 * 3 * dim) * 4     # f32 temporaries
    est = int(1.25 * (stream_bytes + work_bytes + weight_bytes)) + (1 << 20)
    vmem_limit = min(max(est, 32 << 20), 56 << 20)

    row_spec = pl.BlockSpec((block_rows, dim), lambda i: (i, 0))
    out_spec = pl.BlockSpec((block_rows, 3 * dim), lambda i: (i, 0))

    def weight_spec(x):
        # Constant index_map -> never needs a second pipeline buffer.
        return pl.BlockSpec(x.shape, lambda i: (0,) * x.ndim,
                            pipeline_mode=pl.Buffered(1))

    in_specs = [row_spec] * 6 + [weight_spec(w) for w in weight_args]
    out_shape = jax.ShapeDtypeStruct((N, 3 * dim), dtype)

    merged = pl.pallas_call(
        _make_cylinder_projection_kernel(num_layers, dim),
        out_shape=out_shape,
        grid=grid,
        in_specs=in_specs,
        out_specs=out_spec,
        compiler_params=pltpu.CompilerParams(
            dimension_semantics=("parallel",),
            vmem_limit_bytes=vmem_limit),
    )(source_axis, source_arg, source_height, r_axis, r_arg, r_height,
      *weight_args)

    # Layout plumbing only: split the lane-dense slab back into the 3 outputs.
    return merged[:, :dim], merged[:, dim:2 * dim], merged[:, 2 * dim:]


# ---------------------------------------------------------------------------
# Pure-JAX reference (mirrors the PyTorch forward)
# ---------------------------------------------------------------------------
def cylinder_projection_ref(sa, sg, sh, ra, rg, rh, params):
    num_layers = params["num_layers"]
    x = jnp.concatenate([sa + ra, sg + rg, sh + rh], axis=-1)
    for nl in range(1, num_layers + 1):
        x = jax.nn.silu(x @ params[f"w{nl}"] + params[f"b{nl}"])
    x = x @ params["w0"] + params["b0"]
    axis, arg, height = jnp.split(x, 3, axis=-1)
    axis_out = jnp.tanh(axis) * PI
    arg_out = jnp.tanh(2.0 * arg) * (PI / 2.0) + PI / 2.0
    height_out = (jax.nn.sigmoid(2.0 * height) - 0.5) * 2.0 * PI
    return axis_out, arg_out, height_out


def init_params(key, dim, hidden, num_layers, dtype=jnp.float32):
    """Xavier-uniform weights, small random biases, stored [in, out]."""
    params = {"num_layers": num_layers}
    keys = jax.random.split(key, 2 * (num_layers + 1))

    def xavier(k, shape):
        fan_in, fan_out = shape
        bound = (6.0 / (fan_in + fan_out)) ** 0.5
        return jax.random.uniform(k, shape, dtype, minval=-bound, maxval=bound)

    params["w1"] = xavier(keys[0], (3 * dim, hidden))
    params["b1"] = 0.01 * jax.random.normal(keys[1], (hidden,), dtype)
    for nl in range(2, num_layers + 1):
        params[f"w{nl}"] = xavier(keys[2 * (nl - 1)], (hidden, hidden))
        params[f"b{nl}"] = 0.01 * jax.random.normal(
            keys[2 * (nl - 1) + 1], (hidden,), dtype)
    params["w0"] = xavier(keys[-2], (hidden, 3 * dim))
    params["b0"] = 0.01 * jax.random.normal(keys[-1], (3 * dim,), dtype)
    return params


if __name__ == "__main__":
    key = jax.random.PRNGKey(0)
    k_param, k_in = jax.random.split(key)

    batch, dim, hidden, num_layers = 16, 32, 64, 2
    params = init_params(k_param, dim, hidden, num_layers)

    ks = jax.random.split(k_in, 6)
    sa = jax.random.normal(ks[0], (batch, dim), dtype=jnp.float32)
    sg = jax.random.normal(ks[1], (batch, dim), dtype=jnp.float32)
    sh = jax.random.normal(ks[2], (batch, dim), dtype=jnp.float32)
    ra = jax.random.normal(ks[3], (batch, dim), dtype=jnp.float32)
    rg = jax.random.normal(ks[4], (batch, dim), dtype=jnp.float32)
    rh = jax.random.normal(ks[5], (batch, dim), dtype=jnp.float32)

    # Default sizing -> block_rows=8, 2 grid steps: exercises the pipelined,
    # TC-shardable path and the merged lane-dense output.
    axis_o, arg_o, height_o = cylinder_projection(
        sa, sg, sh, ra, rg, rh, params)
    jax.block_until_ready((axis_o, arg_o, height_o))

    axis_r, arg_r, height_r = cylinder_projection_ref(
        sa, sg, sh, ra, rg, rh, params)

    assert jnp.allclose(axis_o, axis_r, atol=2e-5, rtol=1e-5)
    assert jnp.allclose(arg_o, arg_r, atol=2e-5, rtol=1e-5)
    assert jnp.allclose(height_o, height_r, atol=2e-5, rtol=1e-5)

    print("KERNEL_OK")
</pallas_src>

<mosaic_0001>
module attributes {stable_mosaic.version = 11 : i64} {
  func.func @kernel(%arg0: i32, %arg1: memref<8x32xf32, #tpu.memory_space<vmem>>, %arg2: memref<8x32xf32, #tpu.memory_space<vmem>>, %arg3: memref<8x32xf32, #tpu.memory_space<vmem>>, %arg4: memref<8x32xf32, #tpu.memory_space<vmem>>, %arg5: memref<8x32xf32, #tpu.memory_space<vmem>>, %arg6: memref<8x32xf32, #tpu.memory_space<vmem>>, %arg7: memref<32x64xf32, #tpu.memory_space<vmem>>, %arg8: memref<32x64xf32, #tpu.memory_space<vmem>>, %arg9: memref<32x64xf32, #tpu.memory_space<vmem>>, %arg10: memref<1x64xf32, #tpu.memory_space<vmem>>, %arg11: memref<64x64xf32, #tpu.memory_space<vmem>>, %arg12: memref<1x64xf32, #tpu.memory_space<vmem>>, %arg13: memref<64x96xf32, #tpu.memory_space<vmem>>, %arg14: memref<1x96xf32, #tpu.memory_space<vmem>>, %arg15: memref<8x96xf32, #tpu.memory_space<vmem>>) attributes {dimension_semantics = [#tpu.dimension_semantics<parallel>], iteration_bounds = array<i64: 2>, scalar_prefetch = 0 : i64, scratch_operands = 0 : i64, tpu.core_type = #tpu.core_type<tc>, window_params = [{transform_indices = @transform_0, window_bounds = array<i64: 8, 32>}, {transform_indices = @transform_1, window_bounds = array<i64: 8, 32>}, {transform_indices = @transform_2, window_bounds = array<i64: 8, 32>}, {transform_indices = @transform_3, window_bounds = array<i64: 8, 32>}, {transform_indices = @transform_4, window_bounds = array<i64: 8, 32>}, {transform_indices = @transform_5, window_bounds = array<i64: 8, 32>}, {pipeline_mode = #tpu.pipeline_mode<synchronous>, transform_indices = @transform_6, window_bounds = array<i64: 32, 64>}, {pipeline_mode = #tpu.pipeline_mode<synchronous>, transform_indices = @transform_7, window_bounds = array<i64: 32, 64>}, {pipeline_mode = #tpu.pipeline_mode<synchronous>, transform_indices = @transform_8, window_bounds = array<i64: 32, 64>}, {pipeline_mode = #tpu.pipeline_mode<synchronous>, transform_indices = @transform_9, window_bounds = array<i64: 1, 64>}, {pipeline_mode = #tpu.pipeline_mode<synchronous>, transform_indices = @transform_10, window_bounds = array<i64: 64, 64>}, {pipeline_mode = #tpu.pipeline_mode<synchronous>, transform_indices = @transform_11, window_bounds = array<i64: 1, 64>}, {pipeline_mode = #tpu.pipeline_mode<synchronous>, transform_indices = @transform_12, window_bounds = array<i64: 64, 96>}, {pipeline_mode = #tpu.pipeline_mode<synchronous>, transform_indices = @transform_13, window_bounds = array<i64: 1, 96>}, {transform_indices = @transform_14, window_bounds = array<i64: 8, 96>}]} {
    %c0 = arith.constant 0 : index
    %c0_0 = arith.constant 0 : index
    %0 = vector.load %arg1[%c0, %c0_0] : memref<8x32xf32, #tpu.memory_space<vmem>>, vector<8x32xf32>
    %c0_1 = arith.constant 0 : index
    %c0_2 = arith.constant 0 : index
    %1 = vector.load %arg4[%c0_1, %c0_2] : memref<8x32xf32, #tpu.memory_space<vmem>>, vector<8x32xf32>
    %2 = arith.addf %0, %1 : vector<8x32xf32>
    %c0_3 = arith.constant 0 : index
    %c0_4 = arith.constant 0 : index
    %3 = vector.load %arg2[%c0_3, %c0_4] : memref<8x32xf32, #tpu.memory_space<vmem>>, vector<8x32xf32>
    %c0_5 = arith.constant 0 : index
    %c0_6 = arith.constant 0 : index
    %4 = vector.load %arg5[%c0_5, %c0_6] : memref<8x32xf32, #tpu.memory_space<vmem>>, vector<8x32xf32>
    %5 = arith.addf %3, %4 : vector<8x32xf32>
    %c0_7 = arith.constant 0 : index
    %c0_8 = arith.constant 0 : index
    %6 = vector.load %arg3[%c0_7, %c0_8] : memref<8x32xf32, #tpu.memory_space<vmem>>, vector<8x32xf32>
    %c0_9 = arith.constant 0 : index
    %c0_10 = arith.constant 0 : index
    %7 = vector.load %arg6[%c0_9, %c0_10] : memref<8x32xf32, #tpu.memory_space<vmem>>, vector<8x32xf32>
    %8 = arith.addf %6, %7 : vector<8x32xf32>
    %c0_11 = arith.constant 0 : index
    %c0_12 = arith.constant 0 : index
    %9 = vector.load %arg7[%c0_11, %c0_12] : memref<32x64xf32, #tpu.memory_space<vmem>>, vector<32x64xf32>
    %cst = arith.constant dense<0.000000e+00> : vector<8x64xf32>
    %10 = tpu.matmul %2, %9, %cst {dimension_numbers = #tpu.dot_dimension_numbers<[1], [0], [0], [1], [0, 0, 1, 1], [], []>} : vector<8x32xf32>, vector<32x64xf32>, vector<8x64xf32> -> vector<8x64xf32>
    %c0_13 = arith.constant 0 : index
    %c0_14 = arith.constant 0 : index
    %11 = vector.load %arg8[%c0_13, %c0_14] : memref<32x64xf32, #tpu.memory_space<vmem>>, vector<32x64xf32>
    %cst_15 = arith.constant dense<0.000000e+00> : vector<8x64xf32>
    %12 = tpu.matmul %5, %11, %cst_15 {dimension_numbers = #tpu.dot_dimension_numbers<[1], [0], [0], [1], [0, 0, 1, 1], [], []>} : vector<8x32xf32>, vector<32x64xf32>, vector<8x64xf32> -> vector<8x64xf32>
    %13 = arith.addf %10, %12 : vector<8x64xf32>
    %c0_16 = arith.constant 0 : index
    %c0_17 = arith.constant 0 : index
    %14 = vector.load %arg9[%c0_16, %c0_17] : memref<32x64xf32, #tpu.memory_space<vmem>>, vector<32x64xf32>
    %cst_18 = arith.constant dense<0.000000e+00> : vector<8x64xf32>
    %15 = tpu.matmul %8, %14, %cst_18 {dimension_numbers = #tpu.dot_dimension_numbers<[1], [0], [0], [1], [0, 0, 1, 1], [], []>} : vector<8x32xf32>, vector<32x64xf32>, vector<8x64xf32> -> vector<8x64xf32>
    %16 = arith.addf %13, %15 : vector<8x64xf32>
    %c0_19 = arith.constant 0 : index
    %c0_20 = arith.constant 0 : index
    %17 = vector.load %arg10[%c0_19, %c0_20] : memref<1x64xf32, #tpu.memory_space<vmem>>, vector<1x64xf32>
    %18 = vector.broadcast %17 : vector<1x64xf32> to vector<8x64xf32>
    %19 = arith.addf %16, %18 : vector<8x64xf32>
    %20 = arith.negf %19 : vector<8x64xf32>
    %21 = math.exp %20 : vector<8x64xf32>
    %cst_21 = arith.constant 1.000000e+00 : f32
    %22 = vector.broadcast %cst_21 : f32 to vector<8x64xf32>
    %23 = arith.addf %22, %21 : vector<8x64xf32>
    %24 = arith.divf %22, %23 : vector<8x64xf32>
    %25 = arith.mulf %19, %24 : vector<8x64xf32>
    %c0_22 = arith.constant 0 : index
    %c0_23 = arith.constant 0 : index
    %26 = vector.load %arg11[%c0_22, %c0_23] : memref<64x64xf32, #tpu.memory_space<vmem>>, vector<64x64xf32>
    %cst_24 = arith.constant dense<0.000000e+00> : vector<8x64xf32>
    %27 = tpu.matmul %25, %26, %cst_24 {dimension_numbers = #tpu.dot_dimension_numbers<[1], [0], [0], [1], [0, 0, 1, 1], [], []>} : vector<8x64xf32>, vector<64x64xf32>, vector<8x64xf32> -> vector<8x64xf32>
    %c0_25 = arith.constant 0 : index
    %c0_26 = arith.constant 0 : index
    %28 = vector.load %arg12[%c0_25, %c0_26] : memref<1x64xf32, #tpu.memory_space<vmem>>, vector<1x64xf32>
    %29 = vector.broadcast %28 : vector<1x64xf32> to vector<8x64xf32>
    %30 = arith.addf %27, %29 : vector<8x64xf32>
    %31 = arith.negf %30 : vector<8x64xf32>
    %32 = math.exp %31 : vector<8x64xf32>
    %cst_27 = arith.constant 1.000000e+00 : f32
    %33 = vector.broadcast %cst_27 : f32 to vector<8x64xf32>
    %34 = arith.addf %33, %32 : vector<8x64xf32>
    %35 = arith.divf %33, %34 : vector<8x64xf32>
    %36 = arith.mulf %30, %35 : vector<8x64xf32>
    %c0_28 = arith.constant 0 : index
    %c0_29 = arith.constant 0 : index
    %37 = vector.load %arg13[%c0_28, %c0_29] : memref<64x96xf32, #tpu.memory_space<vmem>>, vector<64x96xf32>
    %cst_30 = arith.constant dense<0.000000e+00> : vector<8x96xf32>
    %38 = tpu.matmul %36, %37, %cst_30 {dimension_numbers = #tpu.dot_dimension_numbers<[1], [0], [0], [1], [0, 0, 1, 1], [], []>} : vector<8x64xf32>, vector<64x96xf32>, vector<8x96xf32> -> vector<8x96xf32>
    %c0_31 = arith.constant 0 : index
    %c0_32 = arith.constant 0 : index
    %39 = vector.load %arg14[%c0_31, %c0_32] : memref<1x96xf32, #tpu.memory_space<vmem>>, vector<1x96xf32>
    %40 = vector.broadcast %39 : vector<1x96xf32> to vector<8x96xf32>
    %41 = arith.addf %38, %40 : vector<8x96xf32>
    %42 = tpu.iota {dimensions = array<i32: 1>} : vector<8x96xi32>
    %43 = math.tanh %41 : vector<8x96xf32>
    %cst_33 = arith.constant 3.14159274 : f32
    %44 = vector.broadcast %cst_33 : f32 to vector<8x96xf32>
    %45 = arith.mulf %43, %44 : vector<8x96xf32>
    %cst_34 = arith.constant 2.000000e+00 : f32
    %46 = vector.broadcast %cst_34 : f32 to vector<8x96xf32>
    %47 = arith.mulf %46, %41 : vector<8x96xf32>
    %48 = math.tanh %47 : vector<8x96xf32>
    %cst_35 = arith.constant 1.57079637 : f32
    %49 = vector.broadcast %cst_35 : f32 to vector<8x96xf32>
    %50 = arith.mulf %48, %49 : vector<8x96xf32>
    %cst_36 = arith.constant 1.57079637 : f32
    %51 = vector.broadcast %cst_36 : f32 to vector<8x96xf32>
    %52 = arith.addf %50, %51 : vector<8x96xf32>
    %cst_37 = arith.constant 2.000000e+00 : f32
    %53 = vector.broadcast %cst_37 : f32 to vector<8x96xf32>
    %54 = arith.mulf %53, %41 : vector<8x96xf32>
    %55 = arith.negf %54 : vector<8x96xf32>
    %56 = math.exp %55 : vector<8x96xf32>
    %cst_38 = arith.constant 1.000000e+00 : f32
    %57 = vector.broadcast %cst_38 : f32 to vector<8x96xf32>
    %58 = arith.addf %57, %56 : vector<8x96xf32>
    %59 = arith.divf %57, %58 : vector<8x96xf32>
    %cst_39 = arith.constant 5.000000e-01 : f32
    %60 = vector.broadcast %cst_39 : f32 to vector<8x96xf32>
    %61 = arith.subf %59, %60 : vector<8x96xf32>
    %cst_40 = arith.constant 6.28318548 : f32
    %62 = vector.broadcast %cst_40 : f32 to vector<8x96xf32>
    %63 = arith.mulf %61, %62 : vector<8x96xf32>
    %c32_i32 = arith.constant 32 : i32
    %64 = vector.broadcast %c32_i32 : i32 to vector<8x96xi32>
    %65 = arith.cmpi slt, %42, %64 : vector<8x96xi32>
    %c64_i32 = arith.constant 64 : i32
    %66 = vector.broadcast %c64_i32 : i32 to vector<8x96xi32>
    %67 = arith.cmpi slt, %42, %66 : vector<8x96xi32>
    %68 = arith.select %67, %52, %63 : vector<8x96xi1>, vector<8x96xf32>
    %69 = arith.select %65, %45, %68 : vector<8x96xi1>, vector<8x96xf32>
    %c0_41 = arith.constant 0 : index
    %c0_42 = arith.constant 0 : index
    %70 = vector.load %arg15[%c0_41, %c0_42] : memref<8x96xf32, #tpu.memory_space<vmem>>, vector<8x96xf32>
    tpu.vector_store %arg15[%c0_41, %c0_42], %69 {strides = array<i32>} : memref<8x96xf32, #tpu.memory_space<vmem>>, vector<8x96xf32>,
    return
  }
  func.func @transform_0(%arg0: i32) -> (i32, i32) {
    %c0_i32 = arith.constant 0 : i32
    %c0_i32_0 = arith.constant 0 : i32
    return %arg0, %c0_i32 : i32, i32
  }
  func.func @transform_1(%arg0: i32) -> (i32, i32) {
    %c0_i32 = arith.constant 0 : i32
    %c0_i32_0 = arith.constant 0 : i32
    return %arg0, %c0_i32 : i32, i32
  }
  func.func @transform_2(%arg0: i32) -> (i32, i32) {
    %c0_i32 = arith.constant 0 : i32
    %c0_i32_0 = arith.constant 0 : i32
    return %arg0, %c0_i32 : i32, i32
  }
  func.func @transform_3(%arg0: i32) -> (i32, i32) {
    %c0_i32 = arith.constant 0 : i32
    %c0_i32_0 = arith.constant 0 : i32
    return %arg0, %c0_i32 : i32, i32
  }
  func.func @transform_4(%arg0: i32) -> (i32, i32) {
    %c0_i32 = arith.constant 0 : i32
    %c0_i32_0 = arith.constant 0 : i32
    return %arg0, %c0_i32 : i32, i32
  }
  func.func @transform_5(%arg0: i32) -> (i32, i32) {
    %c0_i32 = arith.constant 0 : i32
    %c0_i32_0 = arith.constant 0 : i32
    return %arg0, %c0_i32 : i32, i32
  }
  func.func @transform_6(%arg0: i32) -> (i32, i32) {
    %c0_i32 = arith.constant 0 : i32
    %c0_i32_0 = arith.constant 0 : i32
    %c0_i32_1 = arith.constant 0 : i32
    return %c0_i32, %c0_i32_0 : i32, i32
  }
  func.func @transform_7(%arg0: i32) -> (i32, i32) {
    %c0_i32 = arith.constant 0 : i32
    %c0_i32_0 = arith.constant 0 : i32
    %c0_i32_1 = arith.constant 0 : i32
    return %c0_i32, %c0_i32_0 : i32, i32
  }
  func.func @transform_8(%arg0: i32) -> (i32, i32) {
    %c0_i32 = arith.constant 0 : i32
    %c0_i32_0 = arith.constant 0 : i32
    %c0_i32_1 = arith.constant 0 : i32
    return %c0_i32, %c0_i32_0 : i32, i32
  }
  func.func @transform_9(%arg0: i32) -> (i32, i32) {
    %c0_i32 = arith.constant 0 : i32
    %c0_i32_0 = arith.constant 0 : i32
    %c0_i32_1 = arith.constant 0 : i32
    return %c0_i32, %c0_i32_0 : i32, i32
  }
  func.func @transform_10(%arg0: i32) -> (i32, i32) {
    %c0_i32 = arith.constant 0 : i32
    %c0_i32_0 = arith.constant 0 : i32
    %c0_i32_1 = arith.constant 0 : i32
    return %c0_i32, %c0_i32_0 : i32, i32
  }
  func.func @transform_11(%arg0: i32) -> (i32, i32) {
    %c0_i32 = arith.constant 0 : i32
    %c0_i32_0 = arith.constant 0 : i32
    %c0_i32_1 = arith.constant 0 : i32
    return %c0_i32, %c0_i32_0 : i32, i32
  }
  func.func @transform_12(%arg0: i32) -> (i32, i32) {
    %c0_i32 = arith.constant 0 : i32
    %c0_i32_0 = arith.constant 0 : i32
    %c0_i32_1 = arith.constant 0 : i32
    return %c0_i32, %c0_i32_0 : i32, i32
  }
  func.func @transform_13(%arg0: i32) -> (i32, i32) {
    %c0_i32 = arith.constant 0 : i32
    %c0_i32_0 = arith.constant 0 : i32
    %c0_i32_1 = arith.constant 0 : i32
    return %c0_i32, %c0_i32_0 : i32, i32
  }
  func.func @transform_14(%arg0: i32) -> (i32, i32) {
    %c0_i32 = arith.constant 0 : i32
    %c0_i32_0 = arith.constant 0 : i32
    return %arg0, %c0_i32 : i32, i32
  }
}

</mosaic_0001>

<llo_original>
// kernel: tpu_custom_call.1
$region0: #{tpu_custom_call.1}
  #allocation0 [shape = 'u32[]', space=smem, size = 0x4, offset = 0x4, fixed_abs, tag = 'smem constant byte address 0x4 - core index']
  #allocation1 [shape = 'u32[72,128]{1,0:T(1,128)}', space=vmem, size = 0x9000, scoped, tag = 'internal scratch']
  %s0 = inlined_call_operand.hbm [shape: f32[16,32], index: 0, kind: input, shape index: {}]
  %s1 = inlined_call_operand.hbm [shape: f32[16,32], index: 1, kind: input, shape index: {}]
  %s2 = inlined_call_operand.hbm [shape: f32[16,32], index: 2, kind: input, shape index: {}]
  %s3 = inlined_call_operand.hbm [shape: f32[16,32], index: 3, kind: input, shape index: {}]
  %s4 = inlined_call_operand.hbm [shape: f32[16,32], index: 4, kind: input, shape index: {}]
  %s5 = inlined_call_operand.hbm [shape: f32[16,32], index: 5, kind: input, shape index: {}]
  %s6 = inlined_call_operand.hbm [shape: f32[32,64], index: 6, kind: input, shape index: {}]
  %s7 = inlined_call_operand.hbm [shape: f32[32,64], index: 7, kind: input, shape index: {}]
  %s8 = inlined_call_operand.hbm [shape: f32[32,64], index: 8, kind: input, shape index: {}]
  %s9 = inlined_call_operand.vmem [shape: f32[1,64], index: 9, kind: input, shape index: {}]
  %s10 = inlined_call_operand.hbm [shape: f32[64,64], index: 10, kind: input, shape index: {}]
  %s11 = inlined_call_operand.vmem [shape: f32[1,64], index: 11, kind: input, shape index: {}]
  %s12 = inlined_call_operand.hbm [shape: f32[64,96], index: 12, kind: input, shape index: {}]
  %s13 = inlined_call_operand.vmem [shape: f32[1,96], index: 13, kind: input, shape index: {}]
  %s14 = inlined_call_operand.hbm [shape: f32[16,96], index: 14, kind: output, shape index: {}]
  %s15 = sld [smem:[#allocation0]]
  $region133: #{tpu_custom_call.1} parent=0
    _
  %s17 = ssub.s32 1, %s15
  %s18 = scalar_select 0, %s17, %s15
  $region1: #{tpu_custom_call.1} parent=0
    #allocation2 [shape = 'u8[8192]{0}', space=vmem, size = 0x2000, scoped, tag = 'input window, operand 0']
    #allocation3 [shape = 's32[2]{0}', space=sflag, size = 0x8, scoped, tag = 'scoped memory for tpu_custom_call.1']
    #allocation4 [shape = 's32[2]{0}', space=sflag, size = 0x8, scoped, tag = 'scoped memory for tpu_custom_call.1']
    #allocation5 [shape = 'u8[8192]{0}', space=vmem, size = 0x2000, scoped, tag = 'input window, operand 1']
    #allocation6 [shape = 's32[2]{0}', space=sflag, size = 0x8, scoped, tag = 'scoped memory for tpu_custom_call.1']
    #allocation7 [shape = 'u8[8192]{0}', space=vmem, size = 0x2000, scoped, tag = 'input window, operand 2']
    #allocation8 [shape = 'u8[8192]{0}', space=vmem, size = 0x2000, scoped, tag = 'input window, operand 3']
    #allocation9 [shape = 's32[2]{0}', space=sflag, size = 0x8, scoped, tag = 'scoped memory for tpu_custom_call.1']
    #allocation10 [shape = 'u8[8192]{0}', space=vmem, size = 0x2000, scoped, tag = 'input window, operand 4']
    #allocation11 [shape = 'u8[8192]{0}', space=vmem, size = 0x2000, scoped, tag = 'input window, operand 5']
    #allocation12 [shape = 's32[2]{0}', space=sflag, size = 0x8, scoped, tag = 'scoped memory for tpu_custom_call.1']
    #allocation13 [shape = 'u8[16384]{0}', space=vmem, size = 0x4000, scoped, tag = 'input window, operand 6, single buffered']
    #allocation14 [shape = 'u8[16384]{0}', space=vmem, size = 0x4000, scoped, tag = 'input window, operand 7, single buffered']
    #allocation15 [shape = 's32[1]{0}', space=sflag, size = 0x4, scoped, tag = 'scoped memory for tpu_custom_call.1']
    #allocation16 [shape = 'u8[16384]{0}', space=vmem, size = 0x4000, scoped, tag = 'input window, operand 8, single buffered']
    #allocation17 [shape = 'u8[32768]{0}', space=vmem, size = 0x8000, scoped, tag = 'input window, operand 10, single buffered']
    #allocation18 [shape = 's32[1]{0}', space=sflag, size = 0x4, scoped, tag = 'scoped memory for tpu_custom_call.1']
    #allocation19 [shape = 'u8[32768]{0}', space=vmem, size = 0x8000, scoped, tag = 'input window, operand 12, single buffered']
    #allocation20 [shape = 'u8[8192]{0}', space=vmem, size = 0x2000, scoped, tag = 'output window, operand 0']
    %19 = vsyncpa [#allocation3], 0
    %s20 = scalar_lea.sflag [#allocation3], 1
    %21 = vsyncpa %s20, 0
    %22 = vsyncpa [#allocation6], 0
    %s23 = scalar_lea.sflag [#allocation6], 1
    %24 = vsyncpa %s23, 0
    %25 = vsyncpa [#allocation9], 0
    %s26 = scalar_lea.sflag [#allocation9], 1
    %27 = vsyncpa %s26, 0
    %28 = vsyncpa [#allocation12], 0
    %s29 = scalar_lea.sflag [#allocation12], 1
    %30 = vsyncpa %s29, 0
    %31 = vsyncpa [#allocation15], 0
    %32 = vsyncpa [#allocation18], 0
    %33 = vsyncpa [#allocation4], 0
    %s34 = scalar_lea.sflag [#allocation4], 1
    %35 = vsyncpa %s34, 0
    loop: start=0, step=1, limit=4
    $region2: #{tpu_custom_call.1} parent=1 // loop_pre_header
      _
    $region3: #{tpu_custom_call.1} parent=1 // loop_header
      %s37 = sphi 0, %s41
      %p38 = scmp.ge.s32.totalorder %s37, 4
      %s47 = sphi 0, %s49
      %s50 = sphi 0, %s47
      %s51 = sphi 0, %s50
      %s67 = sphi 0, %s51
      %s73 = sphi 0, %s75
      %s76 = sphi 0, %s73
      %s77 = sphi 0, %s76
      %s93 = sphi 0, %s77
      %s99 = sphi 0, %s101
      %s102 = sphi 0, %s99
      %s103 = sphi 0, %s102
      %s119 = sphi 0, %s103
      %s125 = sphi 0, %s127
      %s128 = sphi 0, %s125
      %s129 = sphi 0, %s128
      %s145 = sphi 0, %s129
      %s151 = sphi 0, %s153
      %s154 = sphi 0, %s151
      %s155 = sphi 0, %s154
      %s171 = sphi 0, %s155
      %s177 = sphi 0, %s179
      %s180 = sphi 0, %s177
      %s181 = sphi 0, %s180
      %s197 = sphi 0, %s181
      %s201 = sphi 0, %s201
      %s203 = sphi 0, %s201
      %s204 = sphi 0, %s203
      %s218 = sphi 0, %s204
      %s222 = sphi 0, %s222
      %s224 = sphi 0, %s222
      %s225 = sphi 0, %s224
      %s239 = sphi 0, %s225
      %s243 = sphi 0, %s243
      %s245 = sphi 0, %s243
      %s246 = sphi 0, %s245
      %s260 = sphi 0, %s246
      %s264 = sphi 0, %s264
      %s266 = sphi 0, %s264
      %s267 = sphi 0, %s266
      %s281 = sphi 0, %s267
      %s285 = sphi 0, %s285
      %s287 = sphi 0, %s285
      %s288 = sphi 0, %s287
      %s302 = sphi 0, %s288
      %s306 = sphi 0, %s306
      %s308 = sphi 0, %s306
      %s309 = sphi 0, %s308
      %s323 = sphi 0, %s309
      %s327 = sphi 0, %s327
      %s329 = sphi 0, %s327
      %s330 = sphi 0, %s329
      %s344 = sphi 0, %s330
      %s348 = sphi 0, %s348
      %s350 = sphi 0, %s348
      %s351 = sphi 0, %s350
      %s365 = sphi 0, %s351
      %s371 = sphi 0, %s373
      %s374 = sphi 0, %s371
      %s375 = sphi 0, %s374
      %s391 = sphi 0, %s375
    $region4: #{tpu_custom_call.1} parent=1 // loop_header_branch
      %40 = sbr.rel (%p38) target = $region8
    $region5: #{tpu_custom_call.1} parent=1 // loop_body
      %s42 = ssub.s32 %s37, 1
      %s43 = ssub.s32 %s37, 2
      %s44 = sadd.s32 %s37, 1
      %s45 = ssub.s32 %s37, %s44
      %p46 = scmp.eq.s32.totalorder %s45, 0
      %s48 = sadd.s32 %s47, 1
      %s49 = scalar_select %p46, %s47, %s48
      %p52 = pneg %p46
      %p53 = scmp.eq.s32.totalorder %s37, 1
      %p54 = por %p52, %p53
      %p55 = scmp.ne.s32.totalorder %s47, %s50
      %p56 = scmp.eq.s32.totalorder %s37, 0
      %p57 = por %p55, %p56
      %p58 = scmp.ne.s32.totalorder %s47, %s50
      %p59 = scmp.eq.s32.totalorder %s42, 1
      %p60 = por %p58, %p59
      %p61 = scmp.ne.s32.totalorder %s50, %s51
      %p62 = scmp.eq.s32.totalorder %s42, 0
      %p63 = por %p61, %p62
      %p64 = scmp.ne.s32.totalorder %s50, %s51
      %p65 = scmp.eq.s32.totalorder %s43, 1
      %p66 = por %p64, %p65
      %p68 = scmp.ne.s32.totalorder %s51, %s67
      %p69 = scmp.eq.s32.totalorder %s43, 0
      %p70 = por %p68, %p69
      %s71 = ssub.s32 %s37, %s44
      %p72 = scmp.eq.s32.totalorder %s71, 0
      %s74 = sadd.s32 %s73, 1
      %s75 = scalar_select %p72, %s73, %s74
      %p78 = pneg %p72
      %p79 = scmp.eq.s32.totalorder %s37, 1
      %p80 = por %p78, %p79
      %p81 = scmp.ne.s32.totalorder %s73, %s76
      %p82 = scmp.eq.s32.totalorder %s37, 0
      %p83 = por %p81, %p82
      %p84 = scmp.ne.s32.totalorder %s73, %s76
      %p85 = scmp.eq.s32.totalorder %s42, 1
      %p86 = por %p84, %p85
      %p87 = scmp.ne.s32.totalorder %s76, %s77
      %p88 = scmp.eq.s32.totalorder %s42, 0
      %p89 = por %p87, %p88
      %p90 = scmp.ne.s32.totalorder %s76, %s77
      %p91 = scmp.eq.s32.totalorder %s43, 1
      %p92 = por %p90, %p91
      %p94 = scmp.ne.s32.totalorder %s77, %s93
      %p95 = scmp.eq.s32.totalorder %s43, 0
      %p96 = por %p94, %p95
      %s97 = ssub.s32 %s37, %s44
      %p98 = scmp.eq.s32.totalorder %s97, 0
      %s100 = sadd.s32 %s99, 1
      %s101 = scalar_select %p98, %s99, %s100
      %p104 = pneg %p98
      %p105 = scmp.eq.s32.totalorder %s37, 1
      %p106 = por %p104, %p105
      %p107 = scmp.ne.s32.totalorder %s99, %s102
      %p108 = scmp.eq.s32.totalorder %s37, 0
      %p109 = por %p107, %p108
      %p110 = scmp.ne.s32.totalorder %s99, %s102
      %p111 = scmp.eq.s32.totalorder %s42, 1
      %p112 = por %p110, %p111
      %p113 = scmp.ne.s32.totalorder %s102, %s103
      %p114 = scmp.eq.s32.totalorder %s42, 0
      %p115 = por %p113, %p114
      %p116 = scmp.ne.s32.totalorder %s102, %s103
      %p117 = scmp.eq.s32.totalorder %s43, 1
      %p118 = por %p116, %p117
      %p120 = scmp.ne.s32.totalorder %s103, %s119
      %p121 = scmp.eq.s32.totalorder %s43, 0
      %p122 = por %p120, %p121
      %s123 = ssub.s32 %s37, %s44
      %p124 = scmp.eq.s32.totalorder %s123, 0
      %s126 = sadd.s32 %s125, 1
      %s127 = scalar_select %p124, %s125, %s126
      %p130 = pneg %p124
      %p131 = scmp.eq.s32.totalorder %s37, 1
      %p132 = por %p130, %p131
      %p133 = scmp.ne.s32.totalorder %s125, %s128
      %p134 = scmp.eq.s32.totalorder %s37, 0
      %p135 = por %p133, %p134
      %p136 = scmp.ne.s32.totalorder %s125, %s128
      %p137 = scmp.eq.s32.totalorder %s42, 1
      %p138 = por %p136, %p137
      %p139 = scmp.ne.s32.totalorder %s128, %s129
      %p140 = scmp.eq.s32.totalorder %s42, 0
      %p141 = por %p139, %p140
      %p142 = scmp.ne.s32.totalorder %s128, %s129
      %p143 = scmp.eq.s32.totalorder %s43, 1
      %p144 = por %p142, %p143
      %p146 = scmp.ne.s32.totalorder %s129, %s145
      %p147 = scmp.eq.s32.totalorder %s43, 0
      %p148 = por %p146, %p147
      %s149 = ssub.s32 %s37, %s44
      %p150 = scmp.eq.s32.totalorder %s149, 0
      %s152 = sadd.s32 %s151, 1
      %s153 = scalar_select %p150, %s151, %s152
      %p156 = pneg %p150
      %p157 = scmp.eq.s32.totalorder %s37, 1
      %p158 = por %p156, %p157
      %p159 = scmp.ne.s32.totalorder %s151, %s154
      %p160 = scmp.eq.s32.totalorder %s37, 0
      %p161 = por %p159, %p160
      %p162 = scmp.ne.s32.totalorder %s151, %s154
      %p163 = scmp.eq.s32.totalorder %s42, 1
      %p164 = por %p162, %p163
      %p165 = scmp.ne.s32.totalorder %s154, %s155
      %p166 = scmp.eq.s32.totalorder %s42, 0
      %p167 = por %p165, %p166
      %p168 = scmp.ne.s32.totalorder %s154, %s155
      %p169 = scmp.eq.s32.totalorder %s43, 1
      %p170 = por %p168, %p169
      %p172 = scmp.ne.s32.totalorder %s155, %s171
      %p173 = scmp.eq.s32.totalorder %s43, 0
      %p174 = por %p172, %p173
      %s175 = ssub.s32 %s37, %s44
      %p176 = scmp.eq.s32.totalorder %s175, 0
      %s178 = sadd.s32 %s177, 1
      %s179 = scalar_select %p176, %s177, %s178
      %p182 = pneg %p176
      %p183 = scmp.eq.s32.totalorder %s37, 1
      %p184 = por %p182, %p183
      %p185 = scmp.ne.s32.totalorder %s177, %s180
      %p186 = scmp.eq.s32.totalorder %s37, 0
      %p187 = por %p185, %p186
      %p188 = scmp.ne.s32.totalorder %s177, %s180
      %p189 = scmp.eq.s32.totalorder %s42, 1
      %p190 = por %p188, %p189
      %p191 = scmp.ne.s32.totalorder %s180, %s181
      %p192 = scmp.eq.s32.totalorder %s42, 0
      %p193 = por %p191, %p192
      %p194 = scmp.ne.s32.totalorder %s180, %s181
      %p195 = scmp.eq.s32.totalorder %s43, 1
      %p196 = por %p194, %p195
      %p198 = scmp.ne.s32.totalorder %s181, %s197
      %p199 = scmp.eq.s32.totalorder %s43, 0
      %p200 = por %p198, %p199
      %s202 = sadd.s32 %s201, 1
      %p205 = scmp.eq.s32.totalorder %s37, 1
      %p206 = scmp.ne.s32.totalorder %s201, %s203
      %p207 = scmp.eq.s32.totalorder %s37, 0
      %p208 = por %p206, %p207
      %p209 = scmp.ne.s32.totalorder %s201, %s203
      %p210 = scmp.eq.s32.totalorder %s42, 1
      %p211 = por %p209, %p210
      %p212 = scmp.ne.s32.totalorder %s203, %s204
      %p213 = scmp.eq.s32.totalorder %s42, 0
      %p214 = por %p212, %p213
      %p215 = scmp.ne.s32.totalorder %s203, %s204
      %p216 = scmp.eq.s32.totalorder %s43, 1
      %p217 = por %p215, %p216
      %p219 = scmp.ne.s32.totalorder %s204, %s218
      %p220 = scmp.eq.s32.totalorder %s43, 0
      %p221 = por %p219, %p220
      %s223 = sadd.s32 %s222, 1
      %p226 = scmp.eq.s32.totalorder %s37, 1
      %p227 = scmp.ne.s32.totalorder %s222, %s224
      %p228 = scmp.eq.s32.totalorder %s37, 0
      %p229 = por %p227, %p228
      %p230 = scmp.ne.s32.totalorder %s222, %s224
      %p231 = scmp.eq.s32.totalorder %s42, 1
      %p232 = por %p230, %p231
      %p233 = scmp.ne.s32.totalorder %s224, %s225
      %p234 = scmp.eq.s32.totalorder %s42, 0
      %p235 = por %p233, %p234
      %p236 = scmp.ne.s32.totalorder %s224, %s225
      %p237 = scmp.eq.s32.totalorder %s43, 1
      %p238 = por %p236, %p237
      %p240 = scmp.ne.s32.totalorder %s225, %s239
      %p241 = scmp.eq.s32.totalorder %s43, 0
      %p242 = por %p240, %p241
      %s244 = sadd.s32 %s243, 1
      %p247 = scmp.eq.s32.totalorder %s37, 1
      %p248 = scmp.ne.s32.totalorder %s243, %s245
      %p249 = scmp.eq.s32.totalorder %s37, 0
      %p250 = por %p248, %p249
      %p251 = scmp.ne.s32.totalorder %s243, %s245
      %p252 = scmp.eq.s32.totalorder %s42, 1
      %p253 = por %p251, %p252
      %p254 = scmp.ne.s32.totalorder %s245, %s246
      %p255 = scmp.eq.s32.totalorder %s42, 0
      %p256 = por %p254, %p255
      %p257 = scmp.ne.s32.totalorder %s245, %s246
      %p258 = scmp.eq.s32.totalorder %s43, 1
      %p259 = por %p257, %p258
      %p261 = scmp.ne.s32.totalorder %s246, %s260
      %p262 = scmp.eq.s32.totalorder %s43, 0
      %p263 = por %p261, %p262
      %s265 = sadd.s32 %s264, 1
      %p268 = scmp.eq.s32.totalorder %s37, 1
      %p269 = scmp.ne.s32.totalorder %s264, %s266
      %p270 = scmp.eq.s32.totalorder %s37, 0
      %p271 = por %p269, %p270
      %p272 = scmp.ne.s32.totalorder %s264, %s266
      %p273 = scmp.eq.s32.totalorder %s42, 1
      %p274 = por %p272, %p273
      %p275 = scmp.ne.s32.totalorder %s266, %s267
      %p276 = scmp.eq.s32.totalorder %s42, 0
      %p277 = por %p275, %p276
      %p278 = scmp.ne.s32.totalorder %s266, %s267
      %p279 = scmp.eq.s32.totalorder %s43, 1
      %p280 = por %p278, %p279
      %p282 = scmp.ne.s32.totalorder %s267, %s281
      %p283 = scmp.eq.s32.totalorder %s43, 0
      %p284 = por %p282, %p283
      %s286 = sadd.s32 %s285, 1
      %p289 = scmp.eq.s32.totalorder %s37, 1
      %p290 = scmp.ne.s32.totalorder %s285, %s287
      %p291 = scmp.eq.s32.totalorder %s37, 0
      %p292 = por %p290, %p291
      %p293 = scmp.ne.s32.totalorder %s285, %s287
      %p294 = scmp.eq.s32.totalorder %s42, 1
      %p295 = por %p293, %p294
      %p296 = scmp.ne.s32.totalorder %s287, %s288
      %p297 = scmp.eq.s32.totalorder %s42, 0
      %p298 = por %p296, %p297
      %p299 = scmp.ne.s32.totalorder %s287, %s288
      %p300 = scmp.eq.s32.totalorder %s43, 1
      %p301 = por %p299, %p300
      %p303 = scmp.ne.s32.totalorder %s288, %s302
      %p304 = scmp.eq.s32.totalorder %s43, 0
      %p305 = por %p303, %p304
      %s307 = sadd.s32 %s306, 1
      %p310 = scmp.eq.s32.totalorder %s37, 1
      %p311 = scmp.ne.s32.totalorder %s306, %s308
      %p312 = scmp.eq.s32.totalorder %s37, 0
      %p313 = por %p311, %p312
      %p314 = scmp.ne.s32.totalorder %s306, %s308
      %p315 = scmp.eq.s32.totalorder %s42, 1
      %p316 = por %p314, %p315
      %p317 = scmp.ne.s32.totalorder %s308, %s309
      %p318 = scmp.eq.s32.totalorder %s42, 0
      %p319 = por %p317, %p318
      %p320 = scmp.ne.s32.totalorder %s308, %s309
      %p321 = scmp.eq.s32.totalorder %s43, 1
      %p322 = por %p320, %p321
      %p324 = scmp.ne.s32.totalorder %s309, %s323
      %p325 = scmp.eq.s32.totalorder %s43, 0
      %p326 = por %p324, %p325
      %s328 = sadd.s32 %s327, 1
      %p331 = scmp.eq.s32.totalorder %s37, 1
      %p332 = scmp.ne.s32.totalorder %s327, %s329
      %p333 = scmp.eq.s32.totalorder %s37, 0
      %p334 = por %p332, %p333
      %p335 = scmp.ne.s32.totalorder %s327, %s329
      %p336 = scmp.eq.s32.totalorder %s42, 1
      %p337 = por %p335, %p336
      %p338 = scmp.ne.s32.totalorder %s329, %s330
      %p339 = scmp.eq.s32.totalorder %s42, 0
      %p340 = por %p338, %p339
      %p341 = scmp.ne.s32.totalorder %s329, %s330
      %p342 = scmp.eq.s32.totalorder %s43, 1
      %p343 = por %p341, %p342
      %p345 = scmp.ne.s32.totalorder %s330, %s344
      %p346 = scmp.eq.s32.totalorder %s43, 0
      %p347 = por %p345, %p346
      %s349 = sadd.s32 %s348, 1
      %p352 = scmp.eq.s32.totalorder %s37, 1
      %p353 = scmp.ne.s32.totalorder %s348, %s350
      %p354 = scmp.eq.s32.totalorder %s37, 0
      %p355 = por %p353, %p354
      %p356 = scmp.ne.s32.totalorder %s348, %s350
      %p357 = scmp.eq.s32.totalorder %s42, 1
      %p358 = por %p356, %p357
      %p359 = scmp.ne.s32.totalorder %s350, %s351
      %p360 = scmp.eq.s32.totalorder %s42, 0
      %p361 = por %p359, %p360
      %p362 = scmp.ne.s32.totalorder %s350, %s351
      %p363 = scmp.eq.s32.totalorder %s43, 1
      %p364 = por %p362, %p363
      %p366 = scmp.ne.s32.totalorder %s351, %s365
      %p367 = scmp.eq.s32.totalorder %s43, 0
      %p368 = por %p366, %p367
      %s369 = ssub.s32 %s37, %s44
      %p370 = scmp.eq.s32.totalorder %s369, 0
      %s372 = sadd.s32 %s371, 1
      %s373 = scalar_select %p370, %s371, %s372
      %p376 = pneg %p370
      %p377 = scmp.eq.s32.totalorder %s37, 1
      %p378 = por %p376, %p377
      %p379 = scmp.ne.s32.totalorder %s371, %s374
      %p380 = scmp.eq.s32.totalorder %s37, 0
      %p381 = por %p379, %p380
      %p382 = scmp.ne.s32.totalorder %s371, %s374
      %p383 = scmp.eq.s32.totalorder %s42, 1
      %p384 = por %p382, %p383
      %p385 = scmp.ne.s32.totalorder %s374, %s375
      %p386 = scmp.eq.s32.totalorder %s42, 0
      %p387 = por %p385, %p386
      %p388 = scmp.ne.s32.totalorder %s374, %s375
      %p389 = scmp.eq.s32.totalorder %s43, 1
      %p390 = por %p388, %p389
      %p392 = scmp.ne.s32.totalorder %s375, %s391
      %p393 = scmp.eq.s32.totalorder %s43, 0
      %p394 = por %p392, %p393
      %p395 = scmp.le.s32.totalorder 1, %s37
      %p396 = scmp.lt.s32.totalorder %s37, 3
      %p397 = pnand %p395, %p396
      %p398 = pneg %p397
      // Predicated region
      $region9: #{tpu_custom_call.1} parent=5 // pred_check
        _
      $region10: #{tpu_custom_call.1} parent=5 // pred_check_branch
        %400 = sbr.rel (%p397) target = $region12
      $region11: #{tpu_custom_call.1} parent=5 // pred_region
        %s401 = ssub.s32 %s37, 1
        // Predicated region
        $region13: #{tpu_custom_call.1} parent=11 // pred_check
          %p402 = pneg %p214
        $region14: #{tpu_custom_call.1} parent=11 // pred_check_branch
          %404 = sbr.rel (%p402) target = $region16
        $region15: #{tpu_custom_call.1} parent=11 // pred_region
          %406 = vsyncadd [#allocation12], 0
          %s407 = sshll.u32 %s6, 4
          %s408 = int_to_ptr.hbm [resolvable:$true] %s407
          %s409 = sshll.u32 [#allocation13], 4
          %s410 = int_to_ptr.vmem [resolvable:$true] %s409
          %415 = dma.hbm_to_vmem [thread:$0]  %s408, 512, %s410, [#allocation12], 128, 128, 8
        $region16: #{tpu_custom_call.1} parent=11 // pred_fallthru
          _
        // Predicated region
        $region17: #{tpu_custom_call.1} parent=11 // pred_check
          %p416 = pneg %p235
        $region18: #{tpu_custom_call.1} parent=11 // pred_check_branch
          %418 = sbr.rel (%p416) target = $region20
        $region19: #{tpu_custom_call.1} parent=11 // pred_region
          %420 = vsyncadd [#allocation15], 0
          %s421 = sshll.u32 %s7, 4
          %s422 = int_to_ptr.hbm [resolvable:$true] %s421
          %s423 = sshll.u32 [#allocation14], 4
          %s424 = int_to_ptr.vmem [resolvable:$true] %s423
          %429 = dma.hbm_to_vmem [thread:$0]  %s422, 512, %s424, [#allocation15], 128, 128, 8
        $region20: #{tpu_custom_call.1} parent=11 // pred_fallthru
          _
        // Predicated region
        $region21: #{tpu_custom_call.1} parent=11 // pred_check
          %p430 = pneg %p256
        $region22: #{tpu_custom_call.1} parent=11 // pred_check_branch
          %432 = sbr.rel (%p430) target = $region24
        $region23: #{tpu_custom_call.1} parent=11 // pred_region
          %434 = vsyncadd [#allocation15], 0
          %s435 = sshll.u32 %s8, 4
          %s436 = int_to_ptr.hbm [resolvable:$true] %s435
          %s437 = sshll.u32 [#allocation16], 4
          %s438 = int_to_ptr.vmem [resolvable:$true] %s437
          %443 = dma.hbm_to_vmem [thread:$0]  %s436, 512, %s438, [#allocation15], 128, 128, 8
        $region24: #{tpu_custom_call.1} parent=11 // pred_fallthru
          _
        // Predicated region
        $region25: #{tpu_custom_call.1} parent=11 // pred_check
          %p444 = pneg %p277
        $region26: #{tpu_custom_call.1} parent=11 // pred_check_branch
          %446 = sbr.rel (%p444) target = $region28
        $region27: #{tpu_custom_call.1} parent=11 // pred_region
          _
        $region28: #{tpu_custom_call.1} parent=11 // pred_fallthru
          _
        // Predicated region
        $region29: #{tpu_custom_call.1} parent=11 // pred_check
          %p447 = pneg %p298
        $region30: #{tpu_custom_call.1} parent=11 // pred_check_branch
          %449 = sbr.rel (%p447) target = $region32
        $region31: #{tpu_custom_call.1} parent=11 // pred_region
          %451 = vsyncadd [#allocation18], 0
          %s452 = sshll.u32 %s10, 4
          %s453 = int_to_ptr.hbm [resolvable:$true] %s452
          %s454 = sshll.u32 [#allocation17], 4
          %s455 = int_to_ptr.vmem [resolvable:$true] %s454
          %460 = dma.hbm_to_vmem [thread:$0]  %s453, 1024, %s455, [#allocation18], 128, 128, 8
        $region32: #{tpu_custom_call.1} parent=11 // pred_fallthru
          _
        // Predicated region
        $region33: #{tpu_custom_call.1} parent=11 // pred_check
          %p461 = pneg %p319
        $region34: #{tpu_custom_call.1} parent=11 // pred_check_branch
          %463 = sbr.rel (%p461) target = $region36
        $region35: #{tpu_custom_call.1} parent=11 // pred_region
          _
        $region36: #{tpu_custom_call.1} parent=11 // pred_fallthru
          _
        // Predicated region
        $region37: #{tpu_custom_call.1} parent=11 // pred_check
          %p464 = pneg %p340
        $region38: #{tpu_custom_call.1} parent=11 // pred_check_branch
          %466 = sbr.rel (%p464) target = $region40
        $region39: #{tpu_custom_call.1} parent=11 // pred_region
          %468 = vsyncadd [#allocation18], 0
          %s469 = sshll.u32 %s12, 4
          %s470 = int_to_ptr.hbm [resolvable:$true] %s469
          %s471 = sshll.u32 [#allocation19], 4
          %s472 = int_to_ptr.vmem [resolvable:$true] %s471
          %477 = dma.hbm_to_vmem [thread:$0]  %s470, 1024, %s472, [#allocation18], 128, 128, 8
        $region40: #{tpu_custom_call.1} parent=11 // pred_fallthru
          _
        // Predicated region
        $region41: #{tpu_custom_call.1} parent=11 // pred_check
          %p478 = pneg %p361
        $region42: #{tpu_custom_call.1} parent=11 // pred_check_branch
          %480 = sbr.rel (%p478) target = $region44
        $region43: #{tpu_custom_call.1} parent=11 // pred_region
          _
        $region44: #{tpu_custom_call.1} parent=11 // pred_fallthru
          _
      $region12: #{tpu_custom_call.1} parent=5 // pred_fallthru
        _
      %p481 = scmp.lt.s32.totalorder %s37, 2
      // Predicated region
      $region45: #{tpu_custom_call.1} parent=5 // pred_check
        %p482 = pneg %p481
      $region46: #{tpu_custom_call.1} parent=5 // pred_check_branch
        %484 = sbr.rel (%p482) target = $region48
      $region47: #{tpu_custom_call.1} parent=5 // pred_region
        // Predicated region
        $region49: #{tpu_custom_call.1} parent=47 // pred_check
          %p485 = pneg %p57
        $region50: #{tpu_custom_call.1} parent=47 // pred_check_branch
          %487 = sbr.rel (%p485) target = $region52
        $region51: #{tpu_custom_call.1} parent=47 // pred_region
          %s488 = sand.u32 %s47, 1
          %s489 = scalar_lea.sflag [#allocation3], %s488
          %s490 = sand.u32 %s47, 1
          %s491 = smul.addr %s490, 8
          %s492 = scalar_lea.vmem [#allocation2], %s491
          %494 = vsyncadd %s489, 0
          %s495 = smul.addr %s37, 8
          %s496 = scalar_lea.hbm %s0, %s495
          %s498 = sshll.u32 %s496, 4
          %s499 = int_to_ptr.hbm [resolvable:$true] %s498
          %s500 = sshll.u32 %s492, 4
          %s501 = int_to_ptr.vmem [resolvable:$true] %s500
          %503 = dma.hbm_to_vmem [thread:$0]  %s499, 128, %s501, %s489
        $region52: #{tpu_custom_call.1} parent=47 // pred_fallthru
          _
        // Predicated region
        $region53: #{tpu_custom_call.1} parent=47 // pred_check
          %p504 = pneg %p83
        $region54: #{tpu_custom_call.1} parent=47 // pred_check_branch
          %506 = sbr.rel (%p504) target = $region56
        $region55: #{tpu_custom_call.1} parent=47 // pred_region
          %s507 = sand.u32 %s37, 1
          %s508 = scalar_lea.sflag [#allocation6], %s507
          %s509 = sand.u32 %s73, 1
          %s510 = smul.addr %s509, 8
          %s511 = scalar_lea.vmem [#allocation5], %s510
          %513 = vsyncadd %s508, 0
          %s514 = smul.addr %s37, 8
          %s515 = scalar_lea.hbm %s1, %s514
          %s517 = sshll.u32 %s515, 4
          %s518 = int_to_ptr.hbm [resolvable:$true] %s517
          %s519 = sshll.u32 %s511, 4
          %s520 = int_to_ptr.vmem [resolvable:$true] %s519
          %522 = dma.hbm_to_vmem [thread:$0]  %s518, 128, %s520, %s508
        $region56: #{tpu_custom_call.1} parent=47 // pred_fallthru
          _
        // Predicated region
        $region57: #{tpu_custom_call.1} parent=47 // pred_check
          %p523 = pneg %p109
        $region58: #{tpu_custom_call.1} parent=47 // pred_check_branch
          %525 = sbr.rel (%p523) target = $region60
        $region59: #{tpu_custom_call.1} parent=47 // pred_region
          %s526 = sand.u32 %s37, 1
          %s527 = scalar_lea.sflag [#allocation6], %s526
          %s528 = sand.u32 %s99, 1
          %s529 = smul.addr %s528, 8
          %s530 = scalar_lea.vmem [#allocation7], %s529
          %532 = vsyncadd %s527, 0
          %s533 = smul.addr %s37, 8
          %s534 = scalar_lea.hbm %s2, %s533
          %s536 = sshll.u32 %s534, 4
          %s537 = int_to_ptr.hbm [resolvable:$true] %s536
          %s538 = sshll.u32 %s530, 4
          %s539 = int_to_ptr.vmem [resolvable:$true] %s538
          %541 = dma.hbm_to_vmem [thread:$0]  %s537, 128, %s539, %s527
        $region60: #{tpu_custom_call.1} parent=47 // pred_fallthru
          _
        // Predicated region
        $region61: #{tpu_custom_call.1} parent=47 // pred_check
          %p542 = pneg %p135
        $region62: #{tpu_custom_call.1} parent=47 // pred_check_branch
          %544 = sbr.rel (%p542) target = $region64
        $region63: #{tpu_custom_call.1} parent=47 // pred_region
          %s545 = sand.u32 %s37, 1
          %s546 = scalar_lea.sflag [#allocation9], %s545
          %s547 = sand.u32 %s125, 1
          %s548 = smul.addr %s547, 8
          %s549 = scalar_lea.vmem [#allocation8], %s548
          %551 = vsyncadd %s546, 0
          %s552 = smul.addr %s37, 8
          %s553 = scalar_lea.hbm %s3, %s552
          %s555 = sshll.u32 %s553, 4
          %s556 = int_to_ptr.hbm [resolvable:$true] %s555
          %s557 = sshll.u32 %s549, 4
          %s558 = int_to_ptr.vmem [resolvable:$true] %s557
          %560 = dma.hbm_to_vmem [thread:$0]  %s556, 128, %s558, %s546
        $region64: #{tpu_custom_call.1} parent=47 // pred_fallthru
          _
        // Predicated region
        $region65: #{tpu_custom_call.1} parent=47 // pred_check
          %p561 = pneg %p161
        $region66: #{tpu_custom_call.1} parent=47 // pred_check_branch
          %563 = sbr.rel (%p561) target = $region68
        $region67: #{tpu_custom_call.1} parent=47 // pred_region
          %s564 = sand.u32 %s37, 1
          %s565 = scalar_lea.sflag [#allocation9], %s564
          %s566 = sand.u32 %s151, 1
          %s567 = smul.addr %s566, 8
          %s568 = scalar_lea.vmem [#allocation10], %s567
          %570 = vsyncadd %s565, 0
          %s571 = smul.addr %s37, 8
          %s572 = scalar_lea.hbm %s4, %s571
          %s574 = sshll.u32 %s572, 4
          %s575 = int_to_ptr.hbm [resolvable:$true] %s574
          %s576 = sshll.u32 %s568, 4
          %s577 = int_to_ptr.vmem [resolvable:$true] %s576
          %579 = dma.hbm_to_vmem [thread:$0]  %s575, 128, %s577, %s565
        $region68: #{tpu_custom_call.1} parent=47 // pred_fallthru
          _
        // Predicated region
        $region69: #{tpu_custom_call.1} parent=47 // pred_check
          %p580 = pneg %p187
        $region70: #{tpu_custom_call.1} parent=47 // pred_check_branch
          %582 = sbr.rel (%p580) target = $region72
        $region71: #{tpu_custom_call.1} parent=47 // pred_region
          %s583 = sand.u32 %s37, 1
          %s584 = scalar_lea.sflag [#allocation12], %s583
          %s585 = sand.u32 %s177, 1
          %s586 = smul.addr %s585, 8
          %s587 = scalar_lea.vmem [#allocation11], %s586
          %589 = vsyncadd %s584, 0
          %s590 = smul.addr %s37, 8
          %s591 = scalar_lea.hbm %s5, %s590
          %s593 = sshll.u32 %s591, 4
          %s594 = int_to_ptr.hbm [resolvable:$true] %s593
          %s595 = sshll.u32 %s587, 4
          %s596 = int_to_ptr.vmem [resolvable:$true] %s595
          %598 = dma.hbm_to_vmem [thread:$0]  %s594, 128, %s596, %s584
        $region72: #{tpu_custom_call.1} parent=47 // pred_fallthru
          _
      $region48: #{tpu_custom_call.1} parent=5 // pred_fallthru
        _
      %p599 = scmp.le.s32.totalorder 1, %s37
      %p600 = scmp.lt.s32.totalorder %s37, 3
      %p601 = pnand %p599, %p600
      %p602 = pneg %p601
      // Predicated region
      $region73: #{tpu_custom_call.1} parent=5 // pred_check
        _
      $region74: #{tpu_custom_call.1} parent=5 // pred_check_branch
        %604 = sbr.rel (%p601) target = $region76
      $region75: #{tpu_custom_call.1} parent=5 // pred_region
        %s605 = ssub.s32 %s37, 1
        %s606 = sand.u32 %s50, 1
        %s607 = scalar_lea.sflag [#allocation3], %s606
        %s608 = sand.u32 %s50, 1
        %s609 = smul.addr %s608, 8
        %s610 = scalar_lea.vmem [#allocation2], %s609
        // Predicated region
        $region77: #{tpu_custom_call.1} parent=75 // pred_check
          %p611 = pneg %p63
        $region78: #{tpu_custom_call.1} parent=75 // pred_check_branch
          %613 = sbr.rel (%p611) target = $region80
        $region79: #{tpu_custom_call.1} parent=75 // pred_region
          %615 = dma.done %s607, 128
        $region80: #{tpu_custom_call.1} parent=75 // pred_fallthru
          _
        %s616 = sand.u32 %s42, 1
        %s617 = scalar_lea.sflag [#allocation6], %s616
        %s618 = sand.u32 %s76, 1
        %s619 = smul.addr %s618, 8
        %s620 = scalar_lea.vmem [#allocation5], %s619
        // Predicated region
        $region81: #{tpu_custom_call.1} parent=75 // pred_check
          %p621 = pneg %p89
        $region82: #{tpu_custom_call.1} parent=75 // pred_check_branch
          %623 = sbr.rel (%p621) target = $region84
        $region83: #{tpu_custom_call.1} parent=75 // pred_region
          %625 = dma.done %s617, 128
        $region84: #{tpu_custom_call.1} parent=75 // pred_fallthru
          _
        %s626 = sand.u32 %s42, 1
        %s627 = scalar_lea.sflag [#allocation6], %s626
        %s628 = sand.u32 %s102, 1
        %s629 = smul.addr %s628, 8
        %s630 = scalar_lea.vmem [#allocation7], %s629
        // Predicated region
        $region85: #{tpu_custom_call.1} parent=75 // pred_check
          %p631 = pneg %p115
        $region86: #{tpu_custom_call.1} parent=75 // pred_check_branch
          %633 = sbr.rel (%p631) target = $region88
        $region87: #{tpu_custom_call.1} parent=75 // pred_region
          %635 = dma.done %s627, 128
        $region88: #{tpu_custom_call.1} parent=75 // pred_fallthru
          _
        %s636 = sand.u32 %s42, 1
        %s637 = scalar_lea.sflag [#allocation9], %s636
        %s638 = sand.u32 %s128, 1
        %s639 = smul.addr %s638, 8
        %s640 = scalar_lea.vmem [#allocation8], %s639
        // Predicated region
        $region89: #{tpu_custom_call.1} parent=75 // pred_check
          %p641 = pneg %p141
        $region90: #{tpu_custom_call.1} parent=75 // pred_check_branch
          %643 = sbr.rel (%p641) target = $region92
        $region91: #{tpu_custom_call.1} parent=75 // pred_region
          %645 = dma.done %s637, 128
        $region92: #{tpu_custom_call.1} parent=75 // pred_fallthru
          _
        %s646 = sand.u32 %s42, 1
        %s647 = scalar_lea.sflag [#allocation9], %s646
        %s648 = sand.u32 %s154, 1
        %s649 = smul.addr %s648, 8
        %s650 = scalar_lea.vmem [#allocation10], %s649
        // Predicated region
        $region93: #{tpu_custom_call.1} parent=75 // pred_check
          %p651 = pneg %p167
        $region94: #{tpu_custom_call.1} parent=75 // pred_check_branch
          %653 = sbr.rel (%p651) target = $region96
        $region95: #{tpu_custom_call.1} parent=75 // pred_region
          %655 = dma.done %s647, 128
        $region96: #{tpu_custom_call.1} parent=75 // pred_fallthru
          _
        %s656 = sand.u32 %s42, 1
        %s657 = scalar_lea.sflag [#allocation12], %s656
        %s658 = sand.u32 %s180, 1
        %s659 = smul.addr %s658, 8
        %s660 = scalar_lea.vmem [#allocation11], %s659
        // Predicated region
        $region97: #{tpu_custom_call.1} parent=75 // pred_check
          %p661 = pneg %p193
        $region98: #{tpu_custom_call.1} parent=75 // pred_check_branch
          %663 = sbr.rel (%p661) target = $region100
        $region99: #{tpu_custom_call.1} parent=75 // pred_region
          %665 = dma.done %s657, 128
        $region100: #{tpu_custom_call.1} parent=75 // pred_fallthru
          _
        // Predicated region
        $region101: #{tpu_custom_call.1} parent=75 // pred_check
          %p666 = pneg %p214
        $region102: #{tpu_custom_call.1} parent=75 // pred_check_branch
          %668 = sbr.rel (%p666) target = $region104
        $region103: #{tpu_custom_call.1} parent=75 // pred_region
          %670 = dma.done [#allocation12], 512
        $region104: #{tpu_custom_call.1} parent=75 // pred_fallthru
          _
        // Predicated region
        $region105: #{tpu_custom_call.1} parent=75 // pred_check
          %p671 = pneg %p235
        $region106: #{tpu_custom_call.1} parent=75 // pred_check_branch
          %673 = sbr.rel (%p671) target = $region108
        $region107: #{tpu_custom_call.1} parent=75 // pred_region
          %675 = dma.done [#allocation15], 512
        $region108: #{tpu_custom_call.1} parent=75 // pred_fallthru
          _
        // Predicated region
        $region109: #{tpu_custom_call.1} parent=75 // pred_check
          %p676 = pneg %p256
        $region110: #{tpu_custom_call.1} parent=75 // pred_check_branch
          %678 = sbr.rel (%p676) target = $region112
        $region111: #{tpu_custom_call.1} parent=75 // pred_region
          %680 = dma.done [#allocation15], 512
        $region112: #{tpu_custom_call.1} parent=75 // pred_fallthru
          _
        // Predicated region
        $region113: #{tpu_custom_call.1} parent=75 // pred_check
          %p681 = pneg %p298
        $region114: #{tpu_custom_call.1} parent=75 // pred_check_branch
          %683 = sbr.rel (%p681) target = $region116
        $region115: #{tpu_custom_call.1} parent=75 // pred_region
          %685 = dma.done [#allocation18], 1024
        $region116: #{tpu_custom_call.1} parent=75 // pred_fallthru
          _
        // Predicated region
        $region117: #{tpu_custom_call.1} parent=75 // pred_check
          %p686 = pneg %p340
        $region118: #{tpu_custom_call.1} parent=75 // pred_check_branch
          %688 = sbr.rel (%p686) target = $region120
        $region119: #{tpu_custom_call.1} parent=75 // pred_region
          %690 = dma.done [#allocation18], 1024
        $region120: #{tpu_custom_call.1} parent=75 // pred_fallthru
          _
        %s691 = sand.u32 %s50, 1
        %s692 = scalar_lea.sflag [#allocation3], %s691
        %s693 = sand.u32 %s50, 1
        %s694 = smul.addr %s693, 8
        %s695 = scalar_lea.vmem [#allocation2], %s694
        %p696 = pneg %p63
        %p697 = pneg %p60
        %s698 = sand.u32 %s42, 1
        %s699 = scalar_lea.sflag [#allocation6], %s698
        %s700 = sand.u32 %s76, 1
        %s701 = smul.addr %s700, 8
        %s702 = scalar_lea.vmem [#allocation5], %s701
        %p703 = pneg %p89
        %p704 = pneg %p86
        %s705 = sand.u32 %s42, 1
        %s706 = scalar_lea.sflag [#allocation6], %s705
        %s707 = sand.u32 %s102, 1
        %s708 = smul.addr %s707, 8
        %s709 = scalar_lea.vmem [#allocation7], %s708
        %p710 = pneg %p115
        %p711 = pneg %p112
        %s712 = sand.u32 %s42, 1
        %s713 = scalar_lea.sflag [#allocation9], %s712
        %s714 = sand.u32 %s128, 1
        %s715 = smul.addr %s714, 8
        %s716 = scalar_lea.vmem [#allocation8], %s715
        %p717 = pneg %p141
        %p718 = pneg %p138
        %s719 = sand.u32 %s42, 1
        %s720 = scalar_lea.sflag [#allocation9], %s719
        %s721 = sand.u32 %s154, 1
        %s722 = smul.addr %s721, 8
        %s723 = scalar_lea.vmem [#allocation10], %s722
        %p724 = pneg %p167
        %p725 = pneg %p164
        %s726 = sand.u32 %s42, 1
        %s727 = scalar_lea.sflag [#allocation12], %s726
        %s728 = sand.u32 %s180, 1
        %s729 = smul.addr %s728, 8
        %s730 = scalar_lea.vmem [#allocation11], %s729
        %p731 = pneg %p193
        %p732 = pneg %p190
        %p733 = pneg %p214
        %p734 = pneg %p211
        %p735 = pneg %p235
        %p736 = pneg %p232
        %p737 = pneg %p256
        %p738 = pneg %p253
        %p739 = pneg %p277
        %p740 = pneg %p274
        %p741 = pneg %p298
        %p742 = pneg %p295
        %p743 = pneg %p319
        %p744 = pneg %p316
        %p745 = pneg %p340
        %p746 = pneg %p337
        %p747 = pneg %p361
        %p748 = pneg %p358
        %p749 = pneg %p387
        %p750 = pneg %p384
        %s751 = sand.u32 %s374, 1
        %s752 = scalar_lea.sflag [#allocation4], %s751
        %s753 = sand.u32 %s374, 1
        %s754 = smul.addr %s753, 8
        %s755 = scalar_lea.vmem [#allocation20], %s754
        %v756 = vld [vmem:[%s610] sm:$0xff]
        %v757 = vld [vmem:[%s640] sm:$0xff]
        %v758 = vadd.f32 %v756, %v757
        %v759 = vld [vmem:[%s620] sm:$0xff]
        %v760 = vld [vmem:[%s650] sm:$0xff]
        %v761 = vadd.f32 %v759, %v760
        %v762 = vld [vmem:[%s630] sm:$0xff]
        %v763 = vld [vmem:[%s660] sm:$0xff]
        %v764 = vadd.f32 %v762, %v763
        %v765 = vld [vmem:[#allocation13] sm:$0xff]
        %v766 = vld [vmem:[#allocation13 + $0x8] sm:$0xff]
        %v767 = vld [vmem:[#allocation13 + $0x10] sm:$0xff]
        %v768 = vld [vmem:[#allocation13 + $0x18] sm:$0xff]
        %v769 = vld [vmem:[#allocation14] sm:$0xff]
        %v770 = vld [vmem:[#allocation14 + $0x8] sm:$0xff]
        %v771 = vld [vmem:[#allocation14 + $0x10] sm:$0xff]
        %v772 = vld [vmem:[#allocation14 + $0x18] sm:$0xff]
        %vm773 = vcmask 261120
        %v775 = vsel %vm773, %v761, 0
        %777 = vmatpush.msra.mxu0 0.0
        %778 = vmatpush.msra.mxu0 0.0
        %779 = vmatpush.msra.mxu0 0.0
        %780 = vmatpush.msra.mxu0 0.0
        %781 = vmatpush.msra.mxu0 0.0
        %782 = vmatpush.msra.mxu0 0.0
        %783 = vmatpush.msra.mxu0 0.0
        %784 = vmatpush.msra.mxu0 0.0
        %785 = vmatpush.msra.mxu0 0.0
        %786 = vmatpush.msra.mxu0 0.0
        %787 = vmatpush.msra.mxu0 0.0
        %788 = vmatpush.msra.mxu0 0.0
        %789 = vmatpush.msra.mxu0 %v772
        %790 = vmatpush.msra.mxu0 %v771
        %791 = vmatpush.msra.mxu0 %v770
        %792 = vmatpush.msra.mxu0 %v769
        %793 = vmatmul.f32.gmra.mxu0 %v775
        %v794 = vpop.f32.mrf.mxu0
        %v795 = vadd.f32 0.0, %v794
        %796 = vdwg.mxu0
        %v798 = vsel %vm773, %v758, 0
        %800 = vmatpush.msra.mxu0 0.0
        %801 = vmatpush.msra.mxu0 0.0
        %802 = vmatpush.msra.mxu0 0.0
        %803 = vmatpush.msra.mxu0 0.0
        %804 = vmatpush.msra.mxu0 0.0
        %805 = vmatpush.msra.mxu0 0.0
        %806 = vmatpush.msra.mxu0 0.0
        %807 = vmatpush.msra.mxu0 0.0
        %808 = vmatpush.msra.mxu0 0.0
        %809 = vmatpush.msra.mxu0 0.0
        %810 = vmatpush.msra.mxu0 0.0
        %811 = vmatpush.msra.mxu0 0.0
        %812 = vmatpush.msra.mxu0 %v768
        %813 = vmatpush.msra.mxu0 %v767
        %814 = vmatpush.msra.mxu0 %v766
        %815 = vmatpush.msra.mxu0 %v765
        %816 = vmatmul.f32.gmra.mxu0 %v798
        %v817 = vpop.f32.mrf.mxu0
        %v818 = vadd.f32 %v795, %v817
        %819 = vdwg.mxu0
        %v820 = vld [vmem:[#allocation16] sm:$0xff]
        %v821 = vld [vmem:[#allocation16 + $0x8] sm:$0xff]
        %v822 = vld [vmem:[#allocation16 + $0x10] sm:$0xff]
        %v823 = vld [vmem:[#allocation16 + $0x18] sm:$0xff]
        %v825 = vsel %vm773, %v764, 0
        %827 = vmatpush.msra.mxu0 0.0
        %828 = vmatpush.msra.mxu0 0.0
        %829 = vmatpush.msra.mxu0 0.0
        %830 = vmatpush.msra.mxu0 0.0
        %831 = vmatpush.msra.mxu0 0.0
        %832 = vmatpush.msra.mxu0 0.0
        %833 = vmatpush.msra.mxu0 0.0
        %834 = vmatpush.msra.mxu0 0.0
        %835 = vmatpush.msra.mxu0 0.0
        %836 = vmatpush.msra.mxu0 0.0
        %837 = vmatpush.msra.mxu0 0.0
        %838 = vmatpush.msra.mxu0 0.0
        %839 = vmatpush.msra.mxu0 %v823
        %840 = vmatpush.msra.mxu0 %v822
        %841 = vmatpush.msra.mxu0 %v821
        %842 = vmatpush.msra.mxu0 %v820
        %843 = vmatmul.f32.gmra.mxu0 %v825
        %v844 = vpop.f32.mrf.mxu0
        %v845 = vadd.f32 0.0, %v844
        %846 = vdwg.mxu0
        %v847 = vadd.f32 %v818, %v845
        %v848 = vld [vmem:[%s9] sm:$0x1]
        %v850 = vperm.slane %v848, 0
        %v852 = vadd.f32 %v847, %v850
        %v853 = vxor.u32 %v852, 2147483648
        %v854 = vmul.f32 %v853, 1.442695
        %v855 = vpow.pop %v854
        %v856 = vadd.f32 %v855, 1.0
        %v857 = vrcp.pop %v856
        %v858 = vmul.f32 %v856, %v857
        %v859 = vsub.f32 1.0, %v858
        %v860 = vmul.f32 %v857, %v859
        %v861 = vadd.f32 %v857, %v860
        %vm862 = vweird.f32 %v856
        %vm863 = vweird.f32 %v857
        %vm864 = vmor %vm862, %vm863
        %v865 = vsel %vm864, %v857, %v861
        %v866 = vand.u32 2147483647, %v856
        %vm867 = vcmp.eq.f32.partialorder %v866, 8.507059e+37
        %v868 = vand.u32 %v856, 2147483648
        %v869 = vor.u32 1.1754944e-38, %v868
        %v870 = vsel %vm867, %v869, %v865
        %v871 = vmul.f32 1.0, %v870
        %v872 = vmul.f32 %v852, %v871
        %v873 = vld [vmem:[#allocation17] sm:$0xff]
        %v874 = vld [vmem:[#allocation17 + $0x8] sm:$0xff]
        %v875 = vld [vmem:[#allocation17 + $0x10] sm:$0xff]
        %v876 = vld [vmem:[#allocation17 + $0x18] sm:$0xff]
        %v877 = vld [vmem:[#allocation17 + $0x20] sm:$0xff]
        %v878 = vld [vmem:[#allocation17 + $0x28] sm:$0xff]
        %v879 = vld [vmem:[#allocation17 + $0x30] sm:$0xff]
        %v880 = vld [vmem:[#allocation17 + $0x38] sm:$0xff]
        %v881 = vld [vmem:[%s11] sm:$0x1]
        %v883 = vperm.slane %v881, 0
        %vm885 = vcmask 523264
        %v887 = vsel %vm885, %v872, 0
        %889 = vmatpush.msra.mxu0 0.0
        %890 = vmatpush.msra.mxu0 0.0
        %891 = vmatpush.msra.mxu0 0.0
        %892 = vmatpush.msra.mxu0 0.0
        %893 = vmatpush.msra.mxu0 0.0
        %894 = vmatpush.msra.mxu0 0.0
        %895 = vmatpush.msra.mxu0 0.0
        %896 = vmatpush.msra.mxu0 0.0
        %897 = vmatpush.msra.mxu0 %v880
        %898 = vmatpush.msra.mxu0 %v879
        %899 = vmatpush.msra.mxu0 %v878
        %900 = vmatpush.msra.mxu0 %v877
        %901 = vmatpush.msra.mxu0 %v876
        %902 = vmatpush.msra.mxu0 %v875
        %903 = vmatpush.msra.mxu0 %v874
        %904 = vmatpush.msra.mxu0 %v873
        %905 = vmatmul.f32.gmra.mxu0 %v887
        %v906 = vpop.f32.mrf.mxu0
        %v907 = vadd.f32 %v883, %v906
        %908 = vdwg.mxu0
        %v909 = vxor.u32 %v907, 2147483648
        %v910 = vmul.f32 %v909, 1.442695
        %v911 = vpow.pop %v910
        %v912 = vadd.f32 %v911, 1.0
        %v913 = vrcp.pop %v912
        %v914 = vmul.f32 %v912, %v913
        %v915 = vsub.f32 1.0, %v914
        %v916 = vmul.f32 %v913, %v915
        %v917 = vadd.f32 %v913, %v916
        %vm918 = vweird.f32 %v912
        %vm919 = vweird.f32 %v913
        %vm920 = vmor %vm918, %vm919
        %v921 = vsel %vm920, %v913, %v917
        %v922 = vand.u32 2147483647, %v912
        %vm923 = vcmp.eq.f32.partialorder %v922, 8.507059e+37
        %v924 = vand.u32 %v912, 2147483648
        %v925 = vor.u32 1.1754944e-38, %v924
        %v926 = vsel %vm923, %v925, %v921
        %v927 = vmul.f32 1.0, %v926
        %v928 = vmul.f32 %v907, %v927
        %v929 = vld [vmem:[#allocation19] sm:$0xff]
        %v930 = vld [vmem:[#allocation19 + $0x8] sm:$0xff]
        %v931 = vld [vmem:[#allocation19 + $0x10] sm:$0xff]
        %v932 = vld [vmem:[#allocation19 + $0x18] sm:$0xff]
        %v933 = vld [vmem:[#allocation19 + $0x20] sm:$0xff]
        %v934 = vld [vmem:[#allocation19 + $0x28] sm:$0xff]
        %v935 = vld [vmem:[#allocation19 + $0x30] sm:$0xff]
        %v936 = vld [vmem:[#allocation19 + $0x38] sm:$0xff]
        %v937 = vld [vmem:[%s13] sm:$0x1]
        %v939 = vperm.slane %v937, 0
        %v942 = vsel %vm885, %v928, 0
        %944 = vmatpush.msra.mxu0 0.0
        %945 = vmatpush.msra.mxu0 0.0
        %946 = vmatpush.msra.mxu0 0.0
        %947 = vmatpush.msra.mxu0 0.0
        %948 = vmatpush.msra.mxu0 0.0
        %949 = vmatpush.msra.mxu0 0.0
        %950 = vmatpush.msra.mxu0 0.0
        %951 = vmatpush.msra.mxu0 0.0
        %952 = vmatpush.msra.mxu0 %v936
        %953 = vmatpush.msra.mxu0 %v935
        %954 = vmatpush.msra.mxu0 %v934
        %955 = vmatpush.msra.mxu0 %v933
        %956 = vmatpush.msra.mxu0 %v932
        %957 = vmatpush.msra.mxu0 %v931
        %958 = vmatpush.msra.mxu0 %v930
        %959 = vmatpush.msra.mxu0 %v929
        %960 = vmatmul.f32.gmra.mxu0 %v942
        %v961 = vpop.f32.mrf.mxu0
        %v962 = vadd.f32 %v939, %v961
        %963 = vdwg.mxu0
        %v964 = vlaneseq
        %v965 = vand.u32 %v964, 127
        %v966 = vtanh.pop %v962
        %v967 = vmul.f32 %v966, 3.1415927
        %v968 = vmul.f32 %v962, 2.0
        %v969 = vtanh.pop %v968
        %v970 = vmul.f32 %v969, 1.5707964
        %v971 = vadd.f32 %v970, 1.5707964
        %v972 = vxor.u32 %v968, 2147483648
        %v973 = vmul.f32 %v972, 1.442695
        %v974 = vpow.pop %v973
        %v975 = vadd.f32 %v974, 1.0
        %v976 = vrcp.pop %v975
        %v977 = vmul.f32 %v975, %v976
        %v978 = vsub.f32 1.0, %v977
        %v979 = vmul.f32 %v976, %v978
        %v980 = vadd.f32 %v976, %v979
        %vm981 = vweird.f32 %v975
        %vm982 = vweird.f32 %v976
        %vm983 = vmor %vm981, %vm982
        %v984 = vsel %vm983, %v976, %v980
        %v985 = vand.u32 2147483647, %v975
        %vm986 = vcmp.eq.f32.partialorder %v985, 8.507059e+37
        %v987 = vand.u32 %v975, 2147483648
        %v988 = vor.u32 1.1754944e-38, %v987
        %v989 = vsel %vm986, %v988, %v984
        %v990 = vmul.f32 1.0, %v989
        %v991 = vsub.f32 %v990, 0.5
        %v992 = vmul.f32 %v991, 6.2831855
        %vm993 = vcmp.lt.s32.totalorder %v965, 32
        %vm994 = vcmp.lt.s32.totalorder %v965, 64
        %v995 = vsel %vm994, %v971, %v992
        %v996 = vsel %vm993, %v967, %v995
        %vm997 = vcmask 785408
        %998 = vst.msk [vmem:[%s755] sm:$0xff] %vm997, %v996
        %s999 = sand.u32 %s374, 1
        %s1000 = scalar_lea.sflag [#allocation4], %s999
        %s1001 = sand.u32 %s374, 1
        %s1002 = smul.addr %s1001, 8
        %s1003 = scalar_lea.vmem [#allocation20], %s1002
        // Predicated region
        $region121: #{tpu_custom_call.1} parent=75 // pred_check
          %p1004 = pneg %p384
        $region122: #{tpu_custom_call.1} parent=75 // pred_check_branch
          %1006 = sbr.rel (%p1004) target = $region124
        $region123: #{tpu_custom_call.1} parent=75 // pred_region
          %1008 = vsyncadd %s1000, 0
          %s1009 = smul.addr %s42, 8
          %s1010 = scalar_lea.hbm %s14, %s1009
          %s1012 = sshll.u32 %s1003, 4
          %s1013 = int_to_ptr.vmem [resolvable:$true] %s1012
          %s1014 = sshll.u32 %s1010, 4
          %s1015 = int_to_ptr.hbm [resolvable:$true] %s1014
          %1017 = dma.vmem_to_hbm [thread:$0]  %s1013, 128, %s1015, %s1000
        $region124: #{tpu_custom_call.1} parent=75 // pred_fallthru
          _
      $region76: #{tpu_custom_call.1} parent=5 // pred_fallthru
        _
      %p1018 = scmp.le.s32.totalorder 2, %s37
      // Predicated region
      $region125: #{tpu_custom_call.1} parent=5 // pred_check
        %p1019 = pneg %p1018
      $region126: #{tpu_custom_call.1} parent=5 // pred_check_branch
        %1021 = sbr.rel (%p1019) target = $region128
      $region127: #{tpu_custom_call.1} parent=5 // pred_region
        %s1022 = ssub.s32 %s37, 2
        // Predicated region
        $region129: #{tpu_custom_call.1} parent=127 // pred_check
          %p1023 = pneg %p390
        $region130: #{tpu_custom_call.1} parent=127 // pred_check_branch
          %1025 = sbr.rel (%p1023) target = $region132
        $region131: #{tpu_custom_call.1} parent=127 // pred_region
          %s1026 = sand.u32 %s375, 1
          %s1027 = scalar_lea.sflag [#allocation4], %s1026
          %s1028 = sand.u32 %s375, 1
          %s1029 = smul.addr %s1028, 8
          %s1030 = scalar_lea.vmem [#allocation20], %s1029
          %1032 = dma.done %s1027, 128
        $region132: #{tpu_custom_call.1} parent=127 // pred_fallthru
          _
      $region128: #{tpu_custom_call.1} parent=5 // pred_fallthru
        _
    $region6: #{tpu_custom_call.1} parent=1 // loop_footer
      %s41 = sadd.s32 1, %s37
    $region7: #{tpu_custom_call.1} parent=1 // loop_footer_branch
      %36 = sbr.rel target = $region3
    $region8: #{tpu_custom_call.1} parent=1 // loop_exit
      _
    %1033 = vsyncpa [#allocation3], 1
    %s1034 = scalar_lea.sflag [#allocation3], 1
    %1035 = vsyncpa %s1034, 1
    %1036 = vsyncpa [#allocation6], 1
    %s1037 = scalar_lea.sflag [#allocation6], 1
    %1038 = vsyncpa %s1037, 1
    %1039 = vsyncpa [#allocation9], 1
    %s1040 = scalar_lea.sflag [#allocation9], 1
    %1041 = vsyncpa %s1040, 1
    %1042 = vsyncpa [#allocation12], 1
    %s1043 = scalar_lea.sflag [#allocation12], 1
    %1044 = vsyncpa %s1043, 1
    %1045 = vsyncpa [#allocation15], 1
    %1046 = vsyncpa [#allocation18], 1
    %1047 = vsyncpa [#allocation4], 1
    %s1048 = scalar_lea.sflag [#allocation4], 1
    %1049 = vsyncpa %s1048, 1

</llo_original>
